<compile_context>
chip_gen: v6e
topology: v6e:2x2x1
jax: 0.10.0
libtpu: 0.0.40
codegen_flags: <defaults>
</compile_context>

<pallas_src>
import functools

import jax
import jax.numpy as jnp
from jax import lax
from jax.experimental import pallas as pl
from jax.experimental.pallas import tpu as pltpu

BN_EPS = 1e-5

# Batch tile (lanes).  Tunable: 1024-8192 all work.  Per-grid-step fixed cost
# (~0.35us) dominates this tiny-FLOP kernel below ~512-row tiles, and VMEM is
# never the constraint (x tile = TB*16*4 B, weights a few KB) -- safe even on
# v7x's 64 MiB physical / 32 MiB scoped VMEM.
DEFAULT_BATCH_TILE = 2048


def _round_up(n, m):
    return ((n + m - 1) // m) * m


def _choose_batch_tile(batch, tile_max=DEFAULT_BATCH_TILE):
    """Pick batch tile TB (multiple of 128) and padded batch Bp.

    TB is a multiple of 128 so the (out_features, TB) output block is
    lane-dense (unmasked vst) and sublane tiling is satisfied for any
    activation dtype (128 >= 8/16/32).  When the batch is big enough we force
    >= 2 grid steps so the 'parallel' axis shards across v7x's two TensorCores.
    """
    bp_min = _round_up(batch, 128)
    n_steps = max(1, pl.cdiv(bp_min, tile_max))
    if bp_min >= 256:
        n_steps = max(n_steps, 2)          # v7x megacore: keep both TCs busy
    tb = _round_up(pl.cdiv(bp_min, n_steps), 128)
    bp = _round_up(batch, tb)
    return tb, bp


# ----------------------------- Pallas kernel --------------------------------

def _fused_mlp_kernel(*refs, num_hidden, out_is_scalar):
    """refs = (x_ref, wT0, b0, wT1, b1, ..., w_out, b_out, o_ref).

    x_ref is the (TB, F) batch-major input tile; everything downstream is
    (features, batch).  Weights/biases are small full-array VMEM blocks
    (b_out is an SMEM scalar when out_features == 1); intermediates stay in
    vregs / compiler-managed VMEM and only the final (O, TB) block is stored.
    """
    x_ref = refs[0]
    o_ref = refs[-1]
    wb = refs[1:-1]

    x = x_ref[...].astype(jnp.float32)                       # (TB, F)

    # First hidden layer: contract over x's feature (last) axis so the result
    # comes out already transposed, (H0, TB), without materialising x^T.
    w0t = wb[0][...]                                         # (H0, F)
    b0 = wb[1][...]                                          # (H0, 1)
    h = lax.dot_general(w0t, x, (((1,), (1,)), ((), ())),
                        preferred_element_type=jnp.float32) + b0
    h = jnp.maximum(h, 0.0)

    for i in range(1, num_hidden):
        wt = wb[2 * i][...]                                  # (Hi, Hi-1)
        b = wb[2 * i + 1][...]                               # (Hi, 1)
        h = jnp.dot(wt, h, preferred_element_type=jnp.float32) + b
        h = jnp.maximum(h, 0.0)
    # TODO(synk): Dropout is identity in eval mode; training-mode dropout not implemented.

    if out_is_scalar:
        w_col = wb[-2][...]                                  # (H_last, 1)
        b_out = wb[-1][0]                                    # SMEM scalar
        # VPU mul + sublane reduce -> lane-dense (1, TB) row, no masked stores.
        y = jnp.sum(h * w_col, axis=0, keepdims=True) + b_out
    else:
        w_out_t = wb[-2][...]                                # (O, H_last)
        b_out = wb[-1][...]                                  # (O, 1)
        y = jnp.dot(w_out_t, h, preferred_element_type=jnp.float32) + b_out
    o_ref[...] = y.astype(o_ref.dtype)


# ------------------------------- wrappers ------------------------------------

def _full_vmem_spec(shape):
    # whole-array block, re-used (constant index) across the batch grid
    return pl.BlockSpec(shape, lambda i: (0,) * len(shape))


def fold_bn_into_first_linear(params):
    """Compose eval-mode BatchNorm1d with the first Linear (host-side, exact)."""
    scale = params["bn_gamma"] * jax.lax.rsqrt(params["bn_var"] + BN_EPS)
    shift = params["bn_beta"] - params["bn_mean"] * scale
    (w0, b0) = params["linears"][0]
    w0f = scale[:, None] * w0
    b0f = b0 + shift @ w0
    return [(w0f, b0f)] + list(params["linears"][1:])


def mlp_forward(params, x, batch_tile=DEFAULT_BATCH_TILE):
    """Matches MLP.forward in eval() mode (BN running stats, dropout identity)."""
    B, F = x.shape
    linears = fold_bn_into_first_linear(params)
    w_out, b_out = params["out_w"], params["out_b"]
    out_features = w_out.shape[1]
    out_is_scalar = out_features == 1
    num_hidden = len(linears)

    TB, Bp = _choose_batch_tile(B, batch_tile)
    xp = x if Bp == B else jnp.pad(x, ((0, Bp - B), (0, 0)))
    grid = (Bp // TB,)

    args = [xp]
    # TODO(synk): add pipeline_mode=pl.Buffered(3) on this spec if profiling
    # ever shows exposed input DMA after the larger batch tile.
    in_specs = [pl.BlockSpec((TB, F), lambda i: (i, 0))]
    for (w, b) in linears:                                   # w stored (in, out)
        args += [w.T, b.reshape(-1, 1)]                      # (out, in), (out, 1)
        in_specs += [_full_vmem_spec((w.shape[1], w.shape[0])),
                     _full_vmem_spec((w.shape[1], 1))]
    if out_is_scalar:
        args += [w_out, b_out]                               # (H, 1), scalar (1,)
        in_specs += [_full_vmem_spec((w_out.shape[0], 1)),
                     pl.BlockSpec(memory_space=pltpu.MemorySpace.SMEM)]
    else:
        args += [w_out.T, b_out.reshape(-1, 1)]              # (O, H), (O, 1)
        in_specs += [_full_vmem_spec((out_features, w_out.shape[0])),
                     _full_vmem_spec((out_features, 1))]

    kernel = functools.partial(_fused_mlp_kernel, num_hidden=num_hidden,
                               out_is_scalar=out_is_scalar)

    flops = 2 * Bp * (sum(w.shape[0] * w.shape[1] for (w, _) in linears)
                      + w_out.shape[0] * w_out.shape[1])
    bytes_accessed = 4 * (xp.size
                          + sum(w.size + b.size for (w, b) in linears)
                          + w_out.size + b_out.size
                          + Bp * out_features)

    out = pl.pallas_call(
        kernel,
        # Lane-dense output: batch on lanes -> full-width vst writeback.
        out_shape=jax.ShapeDtypeStruct((out_features, Bp), x.dtype),
        grid=grid,
        in_specs=in_specs,
        out_specs=pl.BlockSpec((out_features, TB), lambda i: (0, i)),
        compiler_params=pltpu.CompilerParams(
            dimension_semantics=("parallel",),
            # Footprint is tiny on every generation (double-buffered x tile +
            # a few KB of weights + (O, TB) output); 32 MiB is safe on v7x too.
            vmem_limit_bytes=32 * 1024 * 1024,
        ),
        cost_estimate=pl.CostEstimate(flops=flops, transcendentals=0,
                                      bytes_accessed=bytes_accessed),
    )(*args)
    return out[:, :B].T                                       # back to (B, O)


# --------------------------- parameter creation ------------------------------

def xavier_uniform(key, fan_in, fan_out, gain=1.0):
    # torch.nn.init.xavier_uniform_ on a (out, in) weight; stored here as (in, out)
    limit = gain * jnp.sqrt(6.0 / (fan_in + fan_out))
    return jax.random.uniform(key, (fan_in, fan_out), jnp.float32, -limit, limit)


def make_params(key, in_features, hidden_layers, out_features):
    params = {}
    # BatchNorm1d defaults: gamma=1, beta=0, running_mean=0, running_var=1
    params["bn_gamma"] = jnp.ones((in_features,), jnp.float32)
    params["bn_beta"] = jnp.zeros((in_features,), jnp.float32)
    params["bn_mean"] = jnp.zeros((in_features,), jnp.float32)
    params["bn_var"] = jnp.ones((in_features,), jnp.float32)

    sizes = [in_features] + list(hidden_layers)
    layers = []
    for i in range(len(hidden_layers)):
        key, kw, kb = jax.random.split(key, 3)
        fan_in, fan_out = sizes[i], sizes[i + 1]
        w = xavier_uniform(kw, fan_in, fan_out)
        bound = 1.0 / jnp.sqrt(fan_in)
        b = jax.random.uniform(kb, (fan_out,), jnp.float32, -bound, bound)
        layers.append((w, b))
    params["linears"] = layers

    key, kw, kb = jax.random.split(key, 3)
    fan_in = hidden_layers[-1]
    params["out_w"] = xavier_uniform(kw, fan_in, out_features)
    bound = 1.0 / jnp.sqrt(fan_in)
    params["out_b"] = jax.random.uniform(kb, (out_features,), jnp.float32,
                                         -bound, bound)
    return params


# ------------------------------- reference -----------------------------------

def mlp_reference(params, x):
    """Plain-JAX reference (explicit eval-mode BN, no folding)."""
    x = ((x - params["bn_mean"]) * jax.lax.rsqrt(params["bn_var"] + BN_EPS)
         * params["bn_gamma"] + params["bn_beta"])
    for (w, b) in params["linears"]:
        x = jnp.maximum(x @ w + b, 0.0)
    return x @ params["out_w"] + params["out_b"]


# --------------------------------- main --------------------------------------

if __name__ == "__main__":
    batch = 8
    in_features = 16          # kwargs['in_features'] = 16 (int path, in_seq_len=1)
    hidden_layers = [32, 32]  # kwargs['hidden_layers']
    out_features = 1          # kwargs['out_features']

    key = jax.random.PRNGKey(0)
    kp, kx, kg, kb_, km, kv = jax.random.split(key, 6)
    params = make_params(kp, in_features, hidden_layers, out_features)
    # Non-trivial running stats / affine to exercise the BN-fold path
    # (a freshly constructed module would have gamma=1, beta=0, mean=0, var=1).
    params["bn_gamma"] = jax.random.uniform(kg, (in_features,), jnp.float32, 0.5, 1.5)
    params["bn_beta"] = 0.1 * jax.random.normal(kb_, (in_features,), jnp.float32)
    params["bn_mean"] = 0.1 * jax.random.normal(km, (in_features,), jnp.float32)
    params["bn_var"] = jax.random.uniform(kv, (in_features,), jnp.float32, 0.5, 1.5)

    x = jax.random.normal(kx, (batch, in_features), jnp.float32)

    y = mlp_forward(params, x)
    y = jax.block_until_ready(y)

    y_ref = mlp_reference(params, x)
    assert y.shape == (batch, out_features)
    assert jnp.allclose(y, y_ref, atol=1e-4, rtol=1e-4), "mismatch vs reference"

    print("KERNEL_OK")
</pallas_src>

<mosaic_0001>
module attributes {stable_mosaic.version = 11 : i64} {
  func.func @_fused_mlp_kernel(%arg0: i32, %arg1: memref<128x16xf32, #tpu.memory_space<vmem>>, %arg2: memref<32x16xf32, #tpu.memory_space<vmem>>, %arg3: memref<32x1xf32, #tpu.memory_space<vmem>>, %arg4: memref<32x32xf32, #tpu.memory_space<vmem>>, %arg5: memref<32x1xf32, #tpu.memory_space<vmem>>, %arg6: memref<32x1xf32, #tpu.memory_space<vmem>>, %arg7: memref<1xf32, #tpu.memory_space<smem>>, %arg8: memref<1x128xf32, #tpu.memory_space<vmem>>) attributes {dimension_semantics = [#tpu.dimension_semantics<parallel>], iteration_bounds = array<i64: 1>, scalar_prefetch = 0 : i64, scratch_operands = 0 : i64, tpu.core_type = #tpu.core_type<tc>, window_params = [{transform_indices = @transform_0, window_bounds = array<i64: 128, 16>}, {pipeline_mode = #tpu.pipeline_mode<synchronous>, transform_indices = @transform_1, window_bounds = array<i64: 32, 16>}, {pipeline_mode = #tpu.pipeline_mode<synchronous>, transform_indices = @transform_2, window_bounds = array<i64: 32, 1>}, {pipeline_mode = #tpu.pipeline_mode<synchronous>, transform_indices = @transform_3, window_bounds = array<i64: 32, 32>}, {pipeline_mode = #tpu.pipeline_mode<synchronous>, transform_indices = @transform_4, window_bounds = array<i64: 32, 1>}, {pipeline_mode = #tpu.pipeline_mode<synchronous>, transform_indices = @transform_5, window_bounds = array<i64: 32, 1>}, {transform_indices = @transform_6, window_bounds = array<i64: 1>}, {transform_indices = @transform_7, window_bounds = array<i64: 1, 128>}]} {
    %c0 = arith.constant 0 : index
    %c0_0 = arith.constant 0 : index
    %0 = vector.load %arg1[%c0, %c0_0] : memref<128x16xf32, #tpu.memory_space<vmem>>, vector<128x16xf32>
    %c0_1 = arith.constant 0 : index
    %c0_2 = arith.constant 0 : index
    %1 = vector.load %arg2[%c0_1, %c0_2] : memref<32x16xf32, #tpu.memory_space<vmem>>, vector<32x16xf32>
    %c0_3 = arith.constant 0 : index
    %c0_4 = arith.constant 0 : index
    %2 = vector.load %arg3[%c0_3, %c0_4] : memref<32x1xf32, #tpu.memory_space<vmem>>, vector<32x1xf32>
    %cst = arith.constant dense<0.000000e+00> : vector<32x128xf32>
    %3 = tpu.matmul %1, %0, %cst {dimension_numbers = #tpu.dot_dimension_numbers<[1], [1], [0], [0], [0, 0, 1, 0], [], []>} : vector<32x16xf32>, vector<128x16xf32>, vector<32x128xf32> -> vector<32x128xf32>
    %4 = vector.broadcast %2 : vector<32x1xf32> to vector<32x128xf32>
    %5 = arith.addf %3, %4 : vector<32x128xf32>
    %cst_5 = arith.constant 0.000000e+00 : f32
    %6 = vector.broadcast %cst_5 : f32 to vector<32x128xf32>
    %7 = arith.maximumf %5, %6 : vector<32x128xf32>
    %c0_6 = arith.constant 0 : index
    %c0_7 = arith.constant 0 : index
    %8 = vector.load %arg4[%c0_6, %c0_7] : memref<32x32xf32, #tpu.memory_space<vmem>>, vector<32x32xf32>
    %c0_8 = arith.constant 0 : index
    %c0_9 = arith.constant 0 : index
    %9 = vector.load %arg5[%c0_8, %c0_9] : memref<32x1xf32, #tpu.memory_space<vmem>>, vector<32x1xf32>
    %cst_10 = arith.constant dense<0.000000e+00> : vector<32x128xf32>
    %10 = tpu.matmul %8, %7, %cst_10 {dimension_numbers = #tpu.dot_dimension_numbers<[1], [0], [0], [1], [0, 0, 1, 1], [], []>} : vector<32x32xf32>, vector<32x128xf32>, vector<32x128xf32> -> vector<32x128xf32>
    %11 = vector.broadcast %9 : vector<32x1xf32> to vector<32x128xf32>
    %12 = arith.addf %10, %11 : vector<32x128xf32>
    %cst_11 = arith.constant 0.000000e+00 : f32
    %13 = vector.broadcast %cst_11 : f32 to vector<32x128xf32>
    %14 = arith.maximumf %12, %13 : vector<32x128xf32>
    %c0_12 = arith.constant 0 : index
    %c0_13 = arith.constant 0 : index
    %15 = vector.load %arg6[%c0_12, %c0_13] : memref<32x1xf32, #tpu.memory_space<vmem>>, vector<32x1xf32>
    %c0_14 = arith.constant 0 : index
    %16 = memref.load %arg7[%c0_14] : memref<1xf32, #tpu.memory_space<smem>>
    %17 = vector.broadcast %15 : vector<32x1xf32> to vector<32x128xf32>
    %18 = arith.mulf %14, %17 : vector<32x128xf32>
    %cst_15 = arith.constant dense<0.000000e+00> : vector<128xf32>
    %19 = vector.multi_reduction <add>, %18, %cst_15 [0] : vector<32x128xf32> to vector<128xf32>
    %20 = vector.shape_cast %19 : vector<128xf32> to vector<1x128xf32>
    %21 = vector.broadcast %16 : f32 to vector<1x128xf32>
    %22 = arith.addf %20, %21 : vector<1x128xf32>
    %c0_16 = arith.constant 0 : index
    %c0_17 = arith.constant 0 : index
    %23 = vector.load %arg8[%c0_16, %c0_17] : memref<1x128xf32, #tpu.memory_space<vmem>>, vector<1x128xf32>
    tpu.vector_store %arg8[%c0_16, %c0_17], %22 {strides = array<i32>} : memref<1x128xf32, #tpu.memory_space<vmem>>, vector<1x128xf32>,
    return
  }
  func.func @transform_0(%arg0: i32) -> (i32, i32) {
    %c0_i32 = arith.constant 0 : i32
    %c0_i32_0 = arith.constant 0 : i32
    return %arg0, %c0_i32 : i32, i32
  }
  func.func @transform_1(%arg0: i32) -> (i32, i32) {
    %c0_i32 = arith.constant 0 : i32
    %c0_i32_0 = arith.constant 0 : i32
    %c0_i32_1 = arith.constant 0 : i32
    return %c0_i32, %c0_i32_0 : i32, i32
  }
  func.func @transform_2(%arg0: i32) -> (i32, i32) {
    %c0_i32 = arith.constant 0 : i32
    %c0_i32_0 = arith.constant 0 : i32
    %c0_i32_1 = arith.constant 0 : i32
    return %c0_i32, %c0_i32_0 : i32, i32
  }
  func.func @transform_3(%arg0: i32) -> (i32, i32) {
    %c0_i32 = arith.constant 0 : i32
    %c0_i32_0 = arith.constant 0 : i32
    %c0_i32_1 = arith.constant 0 : i32
    return %c0_i32, %c0_i32_0 : i32, i32
  }
  func.func @transform_4(%arg0: i32) -> (i32, i32) {
    %c0_i32 = arith.constant 0 : i32
    %c0_i32_0 = arith.constant 0 : i32
    %c0_i32_1 = arith.constant 0 : i32
    return %c0_i32, %c0_i32_0 : i32, i32
  }
  func.func @transform_5(%arg0: i32) -> (i32, i32) {
    %c0_i32 = arith.constant 0 : i32
    %c0_i32_0 = arith.constant 0 : i32
    %c0_i32_1 = arith.constant 0 : i32
    return %c0_i32, %c0_i32_0 : i32, i32
  }
  func.func @transform_6(%arg0: i32) -> i32 {
    %c0_i32 = arith.constant 0 : i32
    %c0_i32_0 = arith.constant 0 : i32
    return %c0_i32 : i32
  }
  func.func @transform_7(%arg0: i32) -> (i32, i32) {
    %c0_i32 = arith.constant 0 : i32
    %c0_i32_0 = arith.constant 0 : i32
    return %c0_i32, %arg0 : i32, i32
  }
}

</mosaic_0001>

<llo_original>
// kernel: tpu_custom_call.1
$region0: #{tpu_custom_call.1}
  #allocation0 [shape = 'u32[]', space=smem, size = 0x4, offset = 0x4, fixed_abs, tag = 'smem constant byte address 0x4 - core index']
  #allocation1 [shape = 'u32[144,128]{1,0:T(1,128)}', space=vmem, size = 0x12000, scoped, tag = 'internal scratch']
  #allocation2 [shape = 'f32[1]{0:T(128)S(6)}', space=smem, size = 0x200, scoped, tag = 'scoped memory for tpu_custom_call.1']
  %s0 = inlined_call_operand.vmem [shape: f32[128,16], index: 0, kind: input, shape index: {}]
  %s1 = inlined_call_operand.vmem [shape: f32[32,16], index: 1, kind: input, shape index: {}]
  %s2 = inlined_call_operand.vmem [shape: f32[32,1], index: 2, kind: input, shape index: {}]
  %s3 = inlined_call_operand.vmem [shape: f32[32,32], index: 3, kind: input, shape index: {}]
  %s4 = inlined_call_operand.vmem [shape: f32[32,1], index: 4, kind: input, shape index: {}]
  %s5 = inlined_call_operand.vmem [shape: f32[32,1], index: 5, kind: input, shape index: {}]
  %s6 = inlined_call_operand.<no memory space> [shape: f32[1], index: 6, kind: input, shape index: {}]
  %s7 = inlined_call_operand.hbm [shape: f32[1,128], index: 7, kind: output, shape index: {}]
  %s8 = sld [smem:[#allocation0]]
  $region38: #{tpu_custom_call.1} parent=0
    _
  %s10 = ssub.s32 1, %s8
  %s11 = scalar_select 0, %s10, %s8
  %12 = sst [smem:[#allocation2]] %s6
  $region1: #{tpu_custom_call.1} parent=0
    #allocation3 [shape = 'u8[512]{0}', space=vmem, size = 0x400, scoped, tag = 'output window, operand 0, single buffered']
    #allocation4 [shape = 's32[1]{0}', space=sflag, size = 0x4, scoped, tag = 'scoped memory for tpu_custom_call.1']
    %13 = vsyncpa [#allocation4], 0
    // Predicated region
    $region2: #{tpu_custom_call.1} parent=1 // pred_check
      _
    $region3: #{tpu_custom_call.1} parent=1 // pred_check_branch
      %15 = sbr.rel (0) target = $region5
    $region4: #{tpu_custom_call.1} parent=1 // pred_region
      _
    $region5: #{tpu_custom_call.1} parent=1 // pred_fallthru
      _
    // Predicated region
    $region6: #{tpu_custom_call.1} parent=1 // pred_check
      _
    $region7: #{tpu_custom_call.1} parent=1 // pred_check_branch
      %17 = sbr.rel (0) target = $region9
    $region8: #{tpu_custom_call.1} parent=1 // pred_region
      _
    $region9: #{tpu_custom_call.1} parent=1 // pred_fallthru
      _
    // Predicated region
    $region10: #{tpu_custom_call.1} parent=1 // pred_check
      _
    $region11: #{tpu_custom_call.1} parent=1 // pred_check_branch
      %19 = sbr.rel (0) target = $region13
    $region12: #{tpu_custom_call.1} parent=1 // pred_region
      _
    $region13: #{tpu_custom_call.1} parent=1 // pred_fallthru
      _
    // Predicated region
    $region14: #{tpu_custom_call.1} parent=1 // pred_check
      _
    $region15: #{tpu_custom_call.1} parent=1 // pred_check_branch
      %21 = sbr.rel (0) target = $region17
    $region16: #{tpu_custom_call.1} parent=1 // pred_region
      _
    $region17: #{tpu_custom_call.1} parent=1 // pred_fallthru
      _
    // Predicated region
    $region18: #{tpu_custom_call.1} parent=1 // pred_check
      _
    $region19: #{tpu_custom_call.1} parent=1 // pred_check_branch
      %23 = sbr.rel (0) target = $region21
    $region20: #{tpu_custom_call.1} parent=1 // pred_region
      _
    $region21: #{tpu_custom_call.1} parent=1 // pred_fallthru
      _
    // Predicated region
    $region22: #{tpu_custom_call.1} parent=1 // pred_check
      _
    $region23: #{tpu_custom_call.1} parent=1 // pred_check_branch
      %25 = sbr.rel (0) target = $region25
    $region24: #{tpu_custom_call.1} parent=1 // pred_region
      _
    $region25: #{tpu_custom_call.1} parent=1 // pred_fallthru
      _
    // Predicated region
    $region26: #{tpu_custom_call.1} parent=1 // pred_check
      _
    $region27: #{tpu_custom_call.1} parent=1 // pred_check_branch
      %27 = sbr.rel (0) target = $region29
    $region28: #{tpu_custom_call.1} parent=1 // pred_region
      _
    $region29: #{tpu_custom_call.1} parent=1 // pred_fallthru
      _
    %v28 = vld [vmem:[%s0] sm:$0xff]
    %v29 = vld [vmem:[%s0 + $0x8] sm:$0xff]
    %v30 = vld [vmem:[%s0 + $0x10] sm:$0xff]
    %v31 = vld [vmem:[%s0 + $0x18] sm:$0xff]
    %v32 = vld [vmem:[%s0 + $0x20] sm:$0xff]
    %v33 = vld [vmem:[%s0 + $0x28] sm:$0xff]
    %v34 = vld [vmem:[%s0 + $0x30] sm:$0xff]
    %v35 = vld [vmem:[%s0 + $0x38] sm:$0xff]
    %v36 = vld [vmem:[%s0 + $0x40] sm:$0xff]
    %v37 = vld [vmem:[%s0 + $0x48] sm:$0xff]
    %v38 = vld [vmem:[%s0 + $0x50] sm:$0xff]
    %v39 = vld [vmem:[%s0 + $0x58] sm:$0xff]
    %v40 = vld [vmem:[%s0 + $0x60] sm:$0xff]
    %v41 = vld [vmem:[%s0 + $0x68] sm:$0xff]
    %v42 = vld [vmem:[%s0 + $0x70] sm:$0xff]
    %v43 = vld [vmem:[%s0 + $0x78] sm:$0xff]
    %v44 = vld [vmem:[%s1] sm:$0xff]
    %v45 = vld [vmem:[%s1 + $0x8] sm:$0xff]
    %v46 = vld [vmem:[%s1 + $0x10] sm:$0xff]
    %v47 = vld [vmem:[%s1 + $0x18] sm:$0xff]
    %v48 = vld [vmem:[%s2] sm:$0xff]
    %v49 = vld [vmem:[%s2 + $0x8] sm:$0xff]
    %v50 = vld [vmem:[%s2 + $0x10] sm:$0xff]
    %v51 = vld [vmem:[%s2 + $0x18] sm:$0xff]
    %53 = vset.pattern.permute.xlu0 0
    %54 = vperm.xlu0 %53, %v48
    %v55 = vpop.permute.xlu0 %54
    %58 = vset.pattern.permute.xlu0 0
    %59 = vperm.xlu0 %58, %v49
    %v60 = vpop.permute.xlu0 %59
    %63 = vset.pattern.permute.xlu0 0
    %64 = vperm.xlu0 %63, %v50
    %v65 = vpop.permute.xlu0 %64
    %68 = vset.pattern.permute.xlu0 0
    %69 = vperm.xlu0 %68, %v51
    %v70 = vpop.permute.xlu0 %69
    %vm72 = vcmask 130048
    %v74 = vsel %vm72, %v44, 0
    %v77 = vsel %vm72, %v45, 0
    %v80 = vsel %vm72, %v46, 0
    %v83 = vsel %vm72, %v47, 0
    %v86 = vsel %vm72, %v28, 0
    %v89 = vsel %vm72, %v29, 0
    %v92 = vsel %vm72, %v30, 0
    %v95 = vsel %vm72, %v31, 0
    %v98 = vsel %vm72, %v32, 0
    %v101 = vsel %vm72, %v33, 0
    %v104 = vsel %vm72, %v34, 0
    %v107 = vsel %vm72, %v35, 0
    %v110 = vsel %vm72, %v36, 0
    %v113 = vsel %vm72, %v37, 0
    %v116 = vsel %vm72, %v38, 0
    %v119 = vsel %vm72, %v39, 0
    %v122 = vsel %vm72, %v40, 0
    %v125 = vsel %vm72, %v41, 0
    %v128 = vsel %vm72, %v42, 0
    %v131 = vsel %vm72, %v43, 0
    %133 = vmatprep.subr.mxu0 0.0
    %134 = vmatpush1.xpose.msra.mxu0 %v131
    %135 = vmatprep.subr.mxu0 0.0
    %136 = vmatpush1.xpose.msra.mxu0 %v128
    %137 = vmatprep.subr.mxu0 0.0
    %138 = vmatpush1.xpose.msra.mxu0 %v125
    %139 = vmatprep.subr.mxu0 0.0
    %140 = vmatpush1.xpose.msra.mxu0 %v122
    %141 = vmatprep.subr.mxu0 0.0
    %142 = vmatpush1.xpose.msra.mxu0 %v119
    %143 = vmatprep.subr.mxu0 0.0
    %144 = vmatpush1.xpose.msra.mxu0 %v116
    %145 = vmatprep.subr.mxu0 0.0
    %146 = vmatpush1.xpose.msra.mxu0 %v113
    %147 = vmatprep.subr.mxu0 0.0
    %148 = vmatpush1.xpose.msra.mxu0 %v110
    %149 = vmatprep.subr.mxu0 0.0
    %150 = vmatpush1.xpose.msra.mxu0 %v107
    %151 = vmatprep.subr.mxu0 0.0
    %152 = vmatpush1.xpose.msra.mxu0 %v104
    %153 = vmatprep.subr.mxu0 0.0
    %154 = vmatpush1.xpose.msra.mxu0 %v101
    %155 = vmatprep.subr.mxu0 0.0
    %156 = vmatpush1.xpose.msra.mxu0 %v98
    %157 = vmatprep.subr.mxu0 0.0
    %158 = vmatpush1.xpose.msra.mxu0 %v95
    %159 = vmatprep.subr.mxu0 0.0
    %160 = vmatpush1.xpose.msra.mxu0 %v92
    %161 = vmatprep.subr.mxu0 0.0
    %162 = vmatpush1.xpose.msra.mxu0 %v89
    %163 = vmatprep.subr.mxu0 0.0
    %164 = vmatpush1.xpose.msra.mxu0 %v86
    %165 = vmatprep.subr.mxu0 0.0
    %166 = vmatpush2.xpose.msra.mxu0 0.0
    %167 = vmatprep.subr.mxu0 0.0
    %168 = vmatpush2.xpose.msra.mxu0 0.0
    %169 = vmatprep.subr.mxu0 0.0
    %170 = vmatpush2.xpose.msra.mxu0 0.0
    %171 = vmatprep.subr.mxu0 0.0
    %172 = vmatpush2.xpose.msra.mxu0 0.0
    %173 = vmatprep.subr.mxu0 0.0
    %174 = vmatpush2.xpose.msra.mxu0 0.0
    %175 = vmatprep.subr.mxu0 0.0
    %176 = vmatpush2.xpose.msra.mxu0 0.0
    %177 = vmatprep.subr.mxu0 0.0
    %178 = vmatpush2.xpose.msra.mxu0 0.0
    %179 = vmatprep.subr.mxu0 0.0
    %180 = vmatpush2.xpose.msra.mxu0 0.0
    %181 = vmatprep.subr.mxu0 0.0
    %182 = vmatpush2.xpose.msra.mxu0 0.0
    %183 = vmatprep.subr.mxu0 0.0
    %184 = vmatpush2.xpose.msra.mxu0 0.0
    %185 = vmatprep.subr.mxu0 0.0
    %186 = vmatpush2.xpose.msra.mxu0 0.0
    %187 = vmatprep.subr.mxu0 0.0
    %188 = vmatpush2.xpose.msra.mxu0 0.0
    %189 = vmatprep.subr.mxu0 0.0
    %190 = vmatpush2.xpose.msra.mxu0 0.0
    %191 = vmatprep.subr.mxu0 0.0
    %192 = vmatpush2.xpose.msra.mxu0 0.0
    %193 = vmatprep.subr.mxu0 0.0
    %194 = vmatpush2.xpose.msra.mxu0 0.0
    %195 = vmatprep.subr.mxu0 0.0
    %196 = vmatpush2.xpose.msra.mxu0 0.0
    %197 = vmatprep.mubr.f32.mxu0 0.0
    %198 = vmatmul.mubr.f32.gmra.mxu0 %v74
    %v199 = vpop.f32.mrf.mxu0
    %v200 = vadd.f32 %v55, %v199
    %v201 = vpop.f32.mrf.mxu0
    %202 = vmatprep.mubr.f32.mxu0 0.0
    %203 = vmatmul.mubr.f32.gmra.mxu0 %v77
    %v204 = vpop.f32.mrf.mxu0
    %v205 = vadd.f32 %v60, %v204
    %v206 = vpop.f32.mrf.mxu0
    %207 = vmatprep.mubr.f32.mxu0 0.0
    %208 = vmatmul.mubr.f32.gmra.mxu0 %v80
    %v209 = vpop.f32.mrf.mxu0
    %v210 = vadd.f32 %v65, %v209
    %v211 = vpop.f32.mrf.mxu0
    %212 = vmatprep.mubr.f32.mxu0 0.0
    %213 = vmatmul.mubr.f32.gmra.mxu0 %v83
    %v214 = vpop.f32.mrf.mxu0
    %v215 = vadd.f32 %v70, %v214
    %v216 = vpop.f32.mrf.mxu0
    %217 = vdwg.mxu0
    %v218 = vmax.f32 %v200, 0.0
    %v219 = vmax.f32 %v205, 0.0
    %v220 = vmax.f32 %v210, 0.0
    %v221 = vmax.f32 %v215, 0.0
    %v222 = vld [vmem:[%s3] sm:$0xff]
    %v223 = vld [vmem:[%s3 + $0x8] sm:$0xff]
    %v224 = vld [vmem:[%s3 + $0x10] sm:$0xff]
    %v225 = vld [vmem:[%s3 + $0x18] sm:$0xff]
    %v226 = vld [vmem:[%s4] sm:$0xff]
    %v227 = vld [vmem:[%s4 + $0x8] sm:$0xff]
    %v228 = vld [vmem:[%s4 + $0x10] sm:$0xff]
    %v229 = vld [vmem:[%s4 + $0x18] sm:$0xff]
    %231 = vset.pattern.permute.xlu0 0
    %232 = vperm.xlu0 %231, %v226
    %v233 = vpop.permute.xlu0 %232
    %236 = vset.pattern.permute.xlu0 0
    %237 = vperm.xlu0 %236, %v227
    %v238 = vpop.permute.xlu0 %237
    %241 = vset.pattern.permute.xlu0 0
    %242 = vperm.xlu0 %241, %v228
    %v243 = vpop.permute.xlu0 %242
    %246 = vset.pattern.permute.xlu0 0
    %247 = vperm.xlu0 %246, %v229
    %v248 = vpop.permute.xlu0 %247
    %vm250 = vcmask 261120
    %v252 = vsel %vm250, %v222, 0
    %v255 = vsel %vm250, %v223, 0
    %v258 = vsel %vm250, %v224, 0
    %v261 = vsel %vm250, %v225, 0
    %263 = vmatprep.subr.mxu0 0.0
    %264 = vmatpush1.msra.mxu0 0.0
    %265 = vmatprep.subr.mxu0 0.0
    %266 = vmatpush1.msra.mxu0 0.0
    %267 = vmatprep.subr.mxu0 0.0
    %268 = vmatpush1.msra.mxu0 0.0
    %269 = vmatprep.subr.mxu0 0.0
    %270 = vmatpush1.msra.mxu0 0.0
    %271 = vmatprep.subr.mxu0 0.0
    %272 = vmatpush1.msra.mxu0 0.0
    %273 = vmatprep.subr.mxu0 0.0
    %274 = vmatpush1.msra.mxu0 0.0
    %275 = vmatprep.subr.mxu0 0.0
    %276 = vmatpush1.msra.mxu0 0.0
    %277 = vmatprep.subr.mxu0 0.0
    %278 = vmatpush1.msra.mxu0 0.0
    %279 = vmatprep.subr.mxu0 0.0
    %280 = vmatpush1.msra.mxu0 0.0
    %281 = vmatprep.subr.mxu0 0.0
    %282 = vmatpush1.msra.mxu0 0.0
    %283 = vmatprep.subr.mxu0 0.0
    %284 = vmatpush1.msra.mxu0 0.0
    %285 = vmatprep.subr.mxu0 0.0
    %286 = vmatpush1.msra.mxu0 0.0
    %287 = vmatprep.subr.mxu0 0.0
    %288 = vmatpush1.msra.mxu0 %v221
    %289 = vmatprep.subr.mxu0 0.0
    %290 = vmatpush1.msra.mxu0 %v220
    %291 = vmatprep.subr.mxu0 0.0
    %292 = vmatpush1.msra.mxu0 %v219
    %293 = vmatprep.subr.mxu0 0.0
    %294 = vmatpush1.msra.mxu0 %v218
    %295 = vmatprep.subr.mxu0 0.0
    %296 = vmatpush2.msra.mxu0 0.0
    %297 = vmatprep.subr.mxu0 0.0
    %298 = vmatpush2.msra.mxu0 0.0
    %299 = vmatprep.subr.mxu0 0.0
    %300 = vmatpush2.msra.mxu0 0.0
    %301 = vmatprep.subr.mxu0 0.0
    %302 = vmatpush2.msra.mxu0 0.0
    %303 = vmatprep.subr.mxu0 0.0
    %304 = vmatpush2.msra.mxu0 0.0
    %305 = vmatprep.subr.mxu0 0.0
    %306 = vmatpush2.msra.mxu0 0.0
    %307 = vmatprep.subr.mxu0 0.0
    %308 = vmatpush2.msra.mxu0 0.0
    %309 = vmatprep.subr.mxu0 0.0
    %310 = vmatpush2.msra.mxu0 0.0
    %311 = vmatprep.subr.mxu0 0.0
    %312 = vmatpush2.msra.mxu0 0.0
    %313 = vmatprep.subr.mxu0 0.0
    %314 = vmatpush2.msra.mxu0 0.0
    %315 = vmatprep.subr.mxu0 0.0
    %316 = vmatpush2.msra.mxu0 0.0
    %317 = vmatprep.subr.mxu0 0.0
    %318 = vmatpush2.msra.mxu0 0.0
    %319 = vmatprep.subr.mxu0 0.0
    %320 = vmatpush2.msra.mxu0 0.0
    %321 = vmatprep.subr.mxu0 0.0
    %322 = vmatpush2.msra.mxu0 0.0
    %323 = vmatprep.subr.mxu0 0.0
    %324 = vmatpush2.msra.mxu0 0.0
    %325 = vmatprep.subr.mxu0 0.0
    %326 = vmatpush2.msra.mxu0 0.0
    %327 = vmatprep.mubr.f32.mxu0 0.0
    %328 = vmatmul.mubr.f32.gmra.mxu0 %v252
    %v329 = vpop.f32.mrf.mxu0
    %v330 = vadd.f32 %v233, %v329
    %v331 = vpop.f32.mrf.mxu0
    %332 = vmatprep.mubr.f32.mxu0 0.0
    %333 = vmatmul.mubr.f32.gmra.mxu0 %v255
    %v334 = vpop.f32.mrf.mxu0
    %v335 = vadd.f32 %v238, %v334
    %v336 = vpop.f32.mrf.mxu0
    %337 = vmatprep.mubr.f32.mxu0 0.0
    %338 = vmatmul.mubr.f32.gmra.mxu0 %v258
    %v339 = vpop.f32.mrf.mxu0
    %v340 = vadd.f32 %v243, %v339
    %v341 = vpop.f32.mrf.mxu0
    %342 = vmatprep.mubr.f32.mxu0 0.0
    %343 = vmatmul.mubr.f32.gmra.mxu0 %v261
    %v344 = vpop.f32.mrf.mxu0
    %v345 = vadd.f32 %v248, %v344
    %v346 = vpop.f32.mrf.mxu0
    %347 = vdwg.mxu0
    %v348 = vmax.f32 %v330, 0.0
    %v349 = vmax.f32 %v335, 0.0
    %v350 = vmax.f32 %v340, 0.0
    %v351 = vmax.f32 %v345, 0.0
    %v352 = vld [vmem:[%s5] sm:$0xff]
    %v353 = vld [vmem:[%s5 + $0x8] sm:$0xff]
    %v354 = vld [vmem:[%s5 + $0x10] sm:$0xff]
    %v355 = vld [vmem:[%s5 + $0x18] sm:$0xff]
    %s356 = sld [smem:[#allocation2]]
    %358 = vset.pattern.permute.xlu0 0
    %359 = vperm.xlu0 %358, %v352
    %v360 = vpop.permute.xlu0 %359
    %363 = vset.pattern.permute.xlu0 0
    %364 = vperm.xlu0 %363, %v353
    %v365 = vpop.permute.xlu0 %364
    %368 = vset.pattern.permute.xlu0 0
    %369 = vperm.xlu0 %368, %v354
    %v370 = vpop.permute.xlu0 %369
    %373 = vset.pattern.permute.xlu0 0
    %374 = vperm.xlu0 %373, %v355
    %v375 = vpop.permute.xlu0 %374
    %v377 = vmul.f32 %v348, %v360
    %v378 = vmul.f32 %v349, %v365
    %v379 = vmul.f32 %v350, %v370
    %v380 = vmul.f32 %v351, %v375
    %v381 = vadd.f32 %v377, %v378
    %v382 = vadd.f32 %v381, %v379
    %v383 = vadd.f32 %v382, %v380
    %v384 = vrot.slane %v383, 4
    %v385 = vadd.f32 %v383, %v384
    %v386 = vrot.slane %v385, 2
    %v387 = vadd.f32 %v385, %v386
    %v388 = vrot.slane %v387, 1
    %v389 = vadd.f32 %v387, %v388
    %v390 = vstv %s356
    %v391 = vadd.f32 %v389, %v390
    %392 = vst [vmem:[#allocation3] sm:$0x1] %v391
    // Predicated region
    $region30: #{tpu_custom_call.1} parent=1 // pred_check
      _
    $region31: #{tpu_custom_call.1} parent=1 // pred_check_branch
      %394 = sbr.rel (0) target = $region33
    $region32: #{tpu_custom_call.1} parent=1 // pred_region
      %s396 = ssub.s32 16, 16
      %397 = vsyncadd [#allocation4], %s396
      %s399 = sshll.u32 [#allocation3], 4
      %s400 = int_to_ptr.vmem [resolvable:$true] %s399
      %402 = dma.vmem_to_hbm [thread:$0]  %s400, 16, %s7, [#allocation4]
    $region33: #{tpu_custom_call.1} parent=1 // pred_fallthru
      _
    // Predicated region
    $region34: #{tpu_custom_call.1} parent=1 // pred_check
      _
    $region35: #{tpu_custom_call.1} parent=1 // pred_check_branch
      %404 = sbr.rel (0) target = $region37
    $region36: #{tpu_custom_call.1} parent=1 // pred_region
      %405 = dma.done [#allocation4], 16
    $region37: #{tpu_custom_call.1} parent=1 // pred_fallthru
      _
    %406 = vsyncpa [#allocation4], 1

</llo_original>
